<compile_context>
chip_gen: v7x
topology: tpu7x:2x2x1
jax: 0.10.0
libtpu: 0.0.40
codegen_flags: <defaults>
</compile_context>

<pallas_src>
import math

import jax
import jax.numpy as jnp
from jax.experimental import pallas as pl
from jax.experimental.pallas import tpu as pltpu


# -----------------------------------------------------------------------------
# Kernel: one (tm, H) row-tile of x, one (ti,) chunk of the intermediate dim.
#   h_chunk  = gelu(x @ W1[:, chunk] + b1[chunk])        (tm, ti)  f32
#   partial  = h_chunk.bf16 @ W2[chunk, :]               (tm, H)   f32
#   k <  last: acc += partial
#   k == last: out = acc + partial + b2
# GELU applied per intermediate chunk is exact (elementwise).
# Dropout is identity (eval / inference mode).
# -----------------------------------------------------------------------------
def _ffn_kernel(x_ref, w1_ref, b1_ref, w2_ref, b2_ref, o_ref, acc_ref):
    k = pl.program_id(1)
    nk = pl.num_programs(1)

    @pl.when(k == 0)
    def _():
        acc_ref[...] = jnp.zeros_like(acc_ref)

    x = x_ref[...]                                                 # (tm, H) bf16
    h = jnp.dot(x, w1_ref[...], preferred_element_type=jnp.float32) + b1_ref[...]
    # exact (erf) GELU in f32, matching torch.nn.functional.gelu default
    h = 0.5 * h * (1.0 + jax.lax.erf(h * (1.0 / math.sqrt(2.0))))
    # TODO(synk): nn.Dropout is identity here (eval mode); training-mode dropout
    # would require pltpu.prng_seed / prng_random_bits.
    partial = jnp.dot(h.astype(w2_ref.dtype), w2_ref[...],
                      preferred_element_type=jnp.float32)          # (tm, H) f32

    @pl.when(k < nk - 1)
    def _():
        acc_ref[...] += partial

    @pl.when(k == nk - 1)
    def _():
        o_ref[...] = (acc_ref[...] + partial + b2_ref[...]).astype(o_ref.dtype)


# -----------------------------------------------------------------------------
# Tile selection: VMEM- and MXU-shape aware.
# -----------------------------------------------------------------------------
def _round_up(x, m):
    return ((x + m - 1) // m) * m


def _vmem_tile_bytes(tm, ti, H):
    """Per-step VMEM footprint: double-buffered operands + f32 accumulator."""
    x_b = 2 * tm * H * 2        # bf16 x tile
    w1_b = 2 * H * ti * 2       # bf16 W1 column chunk
    b1_b = 2 * 1 * ti * 4       # f32 b1 chunk
    w2_b = 2 * ti * H * 2       # bf16 W2 row chunk
    b2_b = 2 * 1 * H * 4        # f32 b2
    o_b = 2 * tm * H * 4        # f32 output tile
    acc_b = 1 * tm * H * 4      # f32 accumulator scratch (single buffer)
    return x_b + w1_b + b1_b + w2_b + b2_b + o_b + acc_b


def _choose_tiles(M, H, I):
    try:
        vmem_cap = int(pltpu.get_tpu_info().vmem_capacity_bytes)
    except Exception:
        vmem_cap = 64 * 1024 * 1024       # conservative default (v7x per-TC)
    budget = int(vmem_cap * 0.70)         # headroom for compiler scratch

    # Intermediate-dim chunk: full I when small; otherwise a multiple of 256
    # (v6e/v7x MXU is 2x256 -- never go below 256 for large I).
    if I <= 1024:
        ti_cands = [I]
    else:
        ti_cands = [c for c in (1024, 512, 256) if c <= I]

    # Row tile: as large as the VMEM budget allows (amortizes weight streaming).
    m_ceil = _round_up(max(M, 8), 8)
    tm_cands = [c for c in (1024, 512, 256, 128, 64, 32, 16, 8) if c <= m_ceil]
    if not tm_cands:
        tm_cands = [m_ceil]

    fitting = [(tm, ti) for tm in tm_cands for ti in ti_cands
               if _vmem_tile_bytes(tm, ti, H) <= budget]
    if not fitting:
        fitting = [(tm_cands[-1], ti_cands[-1])]

    # Prefer >= 4 m-steps (software pipelining + dual-TC sharding on v7x) when
    # the problem is big enough; otherwise take the largest fitting tiles.
    for tm, ti in fitting:
        if pl.cdiv(M, tm) >= 4:
            return tm, ti, vmem_cap
    tm, ti = fitting[0]
    return tm, ti, vmem_cap


# -----------------------------------------------------------------------------
# Wrapper
# -----------------------------------------------------------------------------
def feed_forward_pallas(x, w1, b1, w2, b2):
    """x: (B, S, H).  w1: (H, I), b1: (1, I), w2: (I, H), b2: (1, H)."""
    B, S, H = x.shape
    I = w1.shape[1]
    M = B * S
    out_dtype = x.dtype

    tm, ti, vmem_cap = _choose_tiles(M, H, I)

    # Pad M and I to tile multiples (zero padding is exact: zero W2 rows add
    # nothing; padded x rows are sliced off below).
    Mp = _round_up(M, tm)
    Ip = _round_up(I, ti)

    x2d = x.reshape(M, H)
    if Mp != M:
        x2d = jnp.pad(x2d, ((0, Mp - M), (0, 0)))
    if Ip != I:
        w1 = jnp.pad(w1, ((0, 0), (0, Ip - I)))
        b1 = jnp.pad(b1, ((0, 0), (0, Ip - I)))
        w2 = jnp.pad(w2, ((0, Ip - I), (0, 0)))

    # bf16 MXU operands; biases / accumulation / output stay f32.
    x_lo = x2d.astype(jnp.bfloat16)
    w1_lo = w1.astype(jnp.bfloat16)
    w2_lo = w2.astype(jnp.bfloat16)
    b1_f32 = b1.astype(jnp.float32)
    b2_f32 = b2.astype(jnp.float32)

    grid = (Mp // tm, Ip // ti)
    vmem_limit = min(int(vmem_cap * 0.9),
                     max(_vmem_tile_bytes(tm, ti, H) * 5 // 4, 32 * 1024 * 1024))

    out2d = pl.pallas_call(
        _ffn_kernel,
        out_shape=jax.ShapeDtypeStruct((Mp, H), out_dtype),
        grid_spec=pltpu.PrefetchScalarGridSpec(
            num_scalar_prefetch=0,
            grid=grid,
            in_specs=[
                pl.BlockSpec((tm, H), lambda m, k: (m, 0)),   # x row tile
                pl.BlockSpec((H, ti), lambda m, k: (0, k)),   # W1 column chunk
                pl.BlockSpec((1, ti), lambda m, k: (0, k)),   # b1 chunk
                pl.BlockSpec((ti, H), lambda m, k: (k, 0)),   # W2 row chunk
                pl.BlockSpec((1, H), lambda m, k: (0, 0)),    # b2
            ],
            out_specs=pl.BlockSpec((tm, H), lambda m, k: (m, 0)),
            scratch_shapes=[pltpu.VMEM((tm, H), jnp.float32)],
        ),
        compiler_params=pltpu.CompilerParams(
            dimension_semantics=("parallel", "arbitrary"),
            vmem_limit_bytes=vmem_limit,
        ),
    )(x_lo, w1_lo, b1_f32, w2_lo, b2_f32)

    return out2d[:M].reshape(B, S, H)


# -----------------------------------------------------------------------------
# Pure-JAX f32 reference (for a self-check)
# -----------------------------------------------------------------------------
def feed_forward_ref(x, w1, b1, w2, b2):
    h = jnp.einsum("bsh,hi->bsi", x, w1) + b1[0]
    h = 0.5 * h * (1.0 + jax.lax.erf(h / jnp.sqrt(2.0).astype(h.dtype)))
    return jnp.einsum("bsi,ih->bsh", h, w2) + b2[0]


def _make_params(key, H, I):
    k_w1, k_b1, k_w2, k_b2 = jax.random.split(key, 4)
    s = 0.02
    w1 = s * jax.random.normal(k_w1, (H, I), jnp.float32)
    b1 = s * jax.random.normal(k_b1, (1, I), jnp.float32)
    w2 = s * jax.random.normal(k_w2, (I, H), jnp.float32)
    b2 = s * jax.random.normal(k_b2, (1, H), jnp.float32)
    return w1, b1, w2, b2


if __name__ == "__main__":
    key = jax.random.PRNGKey(0)
    k_x, k_x2, k_p = jax.random.split(key, 3)

    # Small shapes consistent with the module's forward.
    B, S, H, I = 2, 8, 32, 64
    x = jax.random.normal(k_x, (B, S, H), jnp.float32)
    w1, b1, w2, b2 = _make_params(k_p, H, I)

    out = jax.block_until_ready(feed_forward_pallas(x, w1, b1, w2, b2))
    ref = jax.block_until_ready(feed_forward_ref(x, w1, b1, w2, b2))
    assert out.shape == (B, S, H)
    assert bool(jnp.allclose(out, ref, atol=2e-3, rtol=2e-2)), "mismatch vs reference"

    # Second check exercising the row-padding path (M not a tile multiple).
    B2, S2 = 2, 5
    x2 = jax.random.normal(k_x2, (B2, S2, H), jnp.float32)
    out2 = jax.block_until_ready(feed_forward_pallas(x2, w1, b1, w2, b2))
    ref2 = jax.block_until_ready(feed_forward_ref(x2, w1, b1, w2, b2))
    assert out2.shape == (B2, S2, H)
    assert bool(jnp.allclose(out2, ref2, atol=2e-3, rtol=2e-2)), "mismatch vs reference (padded)"

    print("KERNEL_OK")
</pallas_src>

<mosaic_0001>
module attributes {stable_mosaic.version = 11 : i64} {
  func.func @_ffn_kernel(%arg0: i32, %arg1: i32, %arg2: memref<16x32xbf16, #tpu.memory_space<vmem>>, %arg3: memref<32x64xbf16, #tpu.memory_space<vmem>>, %arg4: memref<1x64xf32, #tpu.memory_space<vmem>>, %arg5: memref<64x32xbf16, #tpu.memory_space<vmem>>, %arg6: memref<1x32xf32, #tpu.memory_space<vmem>>, %arg7: memref<16x32xf32, #tpu.memory_space<vmem>>, %arg8: memref<16x32xf32, #tpu.memory_space<vmem>>) attributes {dimension_semantics = [#tpu.dimension_semantics<parallel>, #tpu.dimension_semantics<arbitrary>], iteration_bounds = array<i64: 1, 1>, scalar_prefetch = 0 : i64, scratch_operands = 1 : i64, tpu.core_type = #tpu.core_type<tc>, window_params = [{transform_indices = @transform_0, window_bounds = array<i64: 16, 32>}, {transform_indices = @transform_1, window_bounds = array<i64: 32, 64>}, {transform_indices = @transform_2, window_bounds = array<i64: 1, 64>}, {transform_indices = @transform_3, window_bounds = array<i64: 64, 32>}, {pipeline_mode = #tpu.pipeline_mode<synchronous>, transform_indices = @transform_4, window_bounds = array<i64: 1, 32>}, {transform_indices = @transform_5, window_bounds = array<i64: 16, 32>}]} {
    %c0_i32 = arith.constant 0 : i32
    %0 = arith.cmpi eq, %arg1, %c0_i32 : i32
    %1 = arith.extui %0 : i1 to i32
    %c0_i32_0 = arith.constant 0 : i32
    %2 = arith.cmpi ne, %1, %c0_i32_0 : i32
    scf.if %2 {
      %cst_16 = arith.constant 0.000000e+00 : f32
      %26 = vector.broadcast %cst_16 : f32 to vector<16x32xf32>
      %c0_17 = arith.constant 0 : index
      %c0_18 = arith.constant 0 : index
      %27 = vector.load %arg8[%c0_17, %c0_18] : memref<16x32xf32, #tpu.memory_space<vmem>>, vector<16x32xf32>
      tpu.vector_store %arg8[%c0_17, %c0_18], %26 {strides = array<i32>} : memref<16x32xf32, #tpu.memory_space<vmem>>, vector<16x32xf32>,
    } else {
    }
    %c0 = arith.constant 0 : index
    %c0_1 = arith.constant 0 : index
    %3 = vector.load %arg2[%c0, %c0_1] : memref<16x32xbf16, #tpu.memory_space<vmem>>, vector<16x32xbf16>
    %c0_2 = arith.constant 0 : index
    %c0_3 = arith.constant 0 : index
    %4 = vector.load %arg3[%c0_2, %c0_3] : memref<32x64xbf16, #tpu.memory_space<vmem>>, vector<32x64xbf16>
    %cst = arith.constant dense<0.000000e+00> : vector<16x64xf32>
    %5 = tpu.matmul %3, %4, %cst {dimension_numbers = #tpu.dot_dimension_numbers<[1], [0], [0], [1], [0, 0, 1, 1], [], []>} : vector<16x32xbf16>, vector<32x64xbf16>, vector<16x64xf32> -> vector<16x64xf32>
    %c0_4 = arith.constant 0 : index
    %c0_5 = arith.constant 0 : index
    %6 = vector.load %arg4[%c0_4, %c0_5] : memref<1x64xf32, #tpu.memory_space<vmem>>, vector<1x64xf32>
    %7 = vector.broadcast %6 : vector<1x64xf32> to vector<16x64xf32>
    %8 = arith.addf %5, %7 : vector<16x64xf32>
    %cst_6 = arith.constant 5.000000e-01 : f32
    %9 = vector.broadcast %cst_6 : f32 to vector<16x64xf32>
    %10 = arith.mulf %9, %8 : vector<16x64xf32>
    %cst_7 = arith.constant 0.707106769 : f32
    %11 = vector.broadcast %cst_7 : f32 to vector<16x64xf32>
    %12 = arith.mulf %8, %11 : vector<16x64xf32>
    %13 = math.erf %12 : vector<16x64xf32>
    %cst_8 = arith.constant 1.000000e+00 : f32
    %14 = vector.broadcast %cst_8 : f32 to vector<16x64xf32>
    %15 = arith.addf %14, %13 : vector<16x64xf32>
    %16 = arith.mulf %10, %15 : vector<16x64xf32>
    %17 = arith.truncf %16 : vector<16x64xf32> to vector<16x64xbf16>
    %c0_9 = arith.constant 0 : index
    %c0_10 = arith.constant 0 : index
    %18 = vector.load %arg5[%c0_9, %c0_10] : memref<64x32xbf16, #tpu.memory_space<vmem>>, vector<64x32xbf16>
    %cst_11 = arith.constant dense<0.000000e+00> : vector<16x32xf32>
    %19 = tpu.matmul %17, %18, %cst_11 {dimension_numbers = #tpu.dot_dimension_numbers<[1], [0], [0], [1], [0, 0, 1, 1], [], []>} : vector<16x64xbf16>, vector<64x32xbf16>, vector<16x32xf32> -> vector<16x32xf32>
    %c0_i32_12 = arith.constant 0 : i32
    %20 = arith.cmpi slt, %arg1, %c0_i32_12 : i32
    %21 = arith.extui %20 : i1 to i32
    %c0_i32_13 = arith.constant 0 : i32
    %22 = arith.cmpi ne, %21, %c0_i32_13 : i32
    scf.if %22 {
      %c0_16 = arith.constant 0 : index
      %c0_17 = arith.constant 0 : index
      %26 = vector.load %arg8[%c0_16, %c0_17] : memref<16x32xf32, #tpu.memory_space<vmem>>, vector<16x32xf32>
      %27 = arith.addf %26, %19 : vector<16x32xf32>
      %c0_18 = arith.constant 0 : index
      %c0_19 = arith.constant 0 : index
      %28 = vector.load %arg8[%c0_18, %c0_19] : memref<16x32xf32, #tpu.memory_space<vmem>>, vector<16x32xf32>
      tpu.vector_store %arg8[%c0_18, %c0_19], %27 {strides = array<i32>} : memref<16x32xf32, #tpu.memory_space<vmem>>, vector<16x32xf32>,
    } else {
    }
    %c0_i32_14 = arith.constant 0 : i32
    %23 = arith.cmpi eq, %arg1, %c0_i32_14 : i32
    %24 = arith.extui %23 : i1 to i32
    %c0_i32_15 = arith.constant 0 : i32
    %25 = arith.cmpi ne, %24, %c0_i32_15 : i32
    scf.if %25 {
      %c0_16 = arith.constant 0 : index
      %c0_17 = arith.constant 0 : index
      %26 = vector.load %arg8[%c0_16, %c0_17] : memref<16x32xf32, #tpu.memory_space<vmem>>, vector<16x32xf32>
      %27 = arith.addf %26, %19 : vector<16x32xf32>
      %c0_18 = arith.constant 0 : index
      %c0_19 = arith.constant 0 : index
      %28 = vector.load %arg6[%c0_18, %c0_19] : memref<1x32xf32, #tpu.memory_space<vmem>>, vector<1x32xf32>
      %29 = vector.broadcast %28 : vector<1x32xf32> to vector<16x32xf32>
      %30 = arith.addf %27, %29 : vector<16x32xf32>
      %c0_20 = arith.constant 0 : index
      %c0_21 = arith.constant 0 : index
      %31 = vector.load %arg7[%c0_20, %c0_21] : memref<16x32xf32, #tpu.memory_space<vmem>>, vector<16x32xf32>
      tpu.vector_store %arg7[%c0_20, %c0_21], %30 {strides = array<i32>} : memref<16x32xf32, #tpu.memory_space<vmem>>, vector<16x32xf32>,
    } else {
    }
    return
  }
  func.func @transform_0(%arg0: i32, %arg1: i32) -> (i32, i32) {
    %c0_i32 = arith.constant 0 : i32
    %c0_i32_0 = arith.constant 0 : i32
    return %arg0, %c0_i32 : i32, i32
  }
  func.func @transform_1(%arg0: i32, %arg1: i32) -> (i32, i32) {
    %c0_i32 = arith.constant 0 : i32
    %c0_i32_0 = arith.constant 0 : i32
    return %c0_i32, %arg1 : i32, i32
  }
  func.func @transform_2(%arg0: i32, %arg1: i32) -> (i32, i32) {
    %c0_i32 = arith.constant 0 : i32
    %c0_i32_0 = arith.constant 0 : i32
    return %c0_i32, %arg1 : i32, i32
  }
  func.func @transform_3(%arg0: i32, %arg1: i32) -> (i32, i32) {
    %c0_i32 = arith.constant 0 : i32
    %c0_i32_0 = arith.constant 0 : i32
    return %arg1, %c0_i32 : i32, i32
  }
  func.func @transform_4(%arg0: i32, %arg1: i32) -> (i32, i32) {
    %c0_i32 = arith.constant 0 : i32
    %c0_i32_0 = arith.constant 0 : i32
    %c0_i32_1 = arith.constant 0 : i32
    return %c0_i32, %c0_i32_0 : i32, i32
  }
  func.func @transform_5(%arg0: i32, %arg1: i32) -> (i32, i32) {
    %c0_i32 = arith.constant 0 : i32
    %c0_i32_0 = arith.constant 0 : i32
    return %arg0, %c0_i32 : i32, i32
  }
}

</mosaic_0001>

<llo_original>
// kernel: tpu_custom_call.1
$region0: #{tpu_custom_call.1}
  #allocation0 [shape = 'u32[]', space=smem, size = 0x4, offset = 0x4, fixed_abs, tag = 'smem constant byte address 0x4 - core index']
  #allocation1 [shape = 'u32[144,128]{1,0:T(1,128)}', space=vmem, size = 0x12000, scoped, tag = 'internal scratch']
  #allocation2 [shape = 'f32[16,32]{1,0:T(8,128)}', space=vmem, size = 0x2000, scoped, tag = 'scratch operand']
  %s0 = inlined_call_operand.vmem [shape: bf16[16,32], index: 0, kind: input, shape index: {}]
  %s1 = inlined_call_operand.vmem [shape: bf16[32,64], index: 1, kind: input, shape index: {}]
  %s2 = inlined_call_operand.vmem [shape: f32[1,64], index: 2, kind: input, shape index: {}]
  %s3 = inlined_call_operand.vmem [shape: bf16[64,32], index: 3, kind: input, shape index: {}]
  %s4 = inlined_call_operand.vmem [shape: f32[1,32], index: 4, kind: input, shape index: {}]
  %s5 = inlined_call_operand.hbm [shape: f32[16,32], index: 5, kind: output, shape index: {}]
  %s6 = sld [smem:[#allocation0]]
  $region42: #{tpu_custom_call.1} parent=0
    _
  %s8 = ssub.s32 1, %s6
  %s9 = scalar_select 0, %s8, %s6
  $region1: #{tpu_custom_call.1} parent=0
    #allocation3 [shape = 'u8[8192]{0}', space=vmem, size = 0x2000, scoped, tag = 'output window, operand 0, single buffered']
    #allocation4 [shape = 's32[1]{0}', space=sflag, size = 0x4, scoped, tag = 'scoped memory for tpu_custom_call.1']
    %10 = vsyncpa [#allocation4], 0
    // Predicated region
    $region2: #{tpu_custom_call.1} parent=1 // pred_check
      _
    $region3: #{tpu_custom_call.1} parent=1 // pred_check_branch
      %12 = sbr.rel (0) target = $region5
    $region4: #{tpu_custom_call.1} parent=1 // pred_region
      _
    $region5: #{tpu_custom_call.1} parent=1 // pred_fallthru
      _
    // Predicated region
    $region6: #{tpu_custom_call.1} parent=1 // pred_check
      _
    $region7: #{tpu_custom_call.1} parent=1 // pred_check_branch
      %14 = sbr.rel (0) target = $region9
    $region8: #{tpu_custom_call.1} parent=1 // pred_region
      _
    $region9: #{tpu_custom_call.1} parent=1 // pred_fallthru
      _
    // Predicated region
    $region10: #{tpu_custom_call.1} parent=1 // pred_check
      _
    $region11: #{tpu_custom_call.1} parent=1 // pred_check_branch
      %16 = sbr.rel (0) target = $region13
    $region12: #{tpu_custom_call.1} parent=1 // pred_region
      _
    $region13: #{tpu_custom_call.1} parent=1 // pred_fallthru
      _
    // Predicated region
    $region14: #{tpu_custom_call.1} parent=1 // pred_check
      _
    $region15: #{tpu_custom_call.1} parent=1 // pred_check_branch
      %18 = sbr.rel (0) target = $region17
    $region16: #{tpu_custom_call.1} parent=1 // pred_region
      _
    $region17: #{tpu_custom_call.1} parent=1 // pred_fallthru
      _
    // Predicated region
    $region18: #{tpu_custom_call.1} parent=1 // pred_check
      _
    $region19: #{tpu_custom_call.1} parent=1 // pred_check_branch
      %20 = sbr.rel (0) target = $region21
    $region20: #{tpu_custom_call.1} parent=1 // pred_region
      _
    $region21: #{tpu_custom_call.1} parent=1 // pred_fallthru
      _
    %p22 = scmp.eq.s32.totalorder 0, 0
    // Predicated region
    $region22: #{tpu_custom_call.1} parent=1 // pred_check
      %p23 = pneg %p22
    $region23: #{tpu_custom_call.1} parent=1 // pred_check_branch
      %25 = sbr.rel (%p23) target = $region25
    $region24: #{tpu_custom_call.1} parent=1 // pred_region
      %vm26 = vcmask 261120
      %27 = vst.msk [vmem:[#allocation2] sm:$0xff] %vm26, 0.0
      %28 = vst.msk [vmem:[#allocation2 + $0x8] sm:$0xff] %vm26, 0.0
    $region25: #{tpu_custom_call.1} parent=1 // pred_fallthru
      _
    %v29 = vld [vmem:[%s0] sm:$0xf]
    %v30 = vld [vmem:[%s0 + $0x4] sm:$0xf]
    %v31 = vld [vmem:[%s1] sm:$0xf]
    %v32 = vld [vmem:[%s1 + $0x4] sm:$0xf]
    %v33 = vld [vmem:[%s1 + $0x8] sm:$0xf]
    %v34 = vld [vmem:[%s1 + $0xc] sm:$0xf]
    %v35 = vld [vmem:[%s2] sm:$0x1]
    %v37 = vlaneseq
    %v38 = vshrl.u32 %v37, 7
    %v39 = vsub.s32 0, %v38
    %v40 = vrot.slane %v35, %v39
    %v44 = vunpack.c.l.b16 %v29
    %v45 = vunpack.c.l.b16 %v30
    %v46 = vpack.c.b16 %v45, %v44
    %v51 = vunpack.c.l.b16 %v31
    %v52 = vunpack.c.l.b16 %v32
    %v53 = vunpack.c.l.b16 %v33
    %v54 = vunpack.c.l.b16 %v34
    %v55 = vpack.c.b16 %v52, %v51
    %v56 = vpack.c.b16 %v54, %v53
    %vm59 = vcmask 261120
    %v61 = vsel %vm59, %v46, 0
    %63 = vmatprep.subr.bf16.mxu0 0
    %64 = vmatpush1.bf16.msra.mxu0 %v55
    %65 = vmatprep.subr.bf16.mxu0 0
    %66 = vmatpush1.bf16.msra.mxu0 %v56
    %67 = vmatprep.subr.bf16.mxu0 0
    %68 = vmatpush1.bf16.msra.mxu0 0
    %69 = vmatprep.subr.bf16.mxu0 0
    %70 = vmatpush1.bf16.msra.mxu0 0
    %71 = vmatprep.subr.bf16.mxu0 0
    %72 = vmatpush1.bf16.msra.mxu0 0
    %73 = vmatprep.subr.bf16.mxu0 0
    %74 = vmatpush1.bf16.msra.mxu0 0
    %75 = vmatprep.subr.bf16.mxu0 0
    %76 = vmatpush1.bf16.msra.mxu0 0
    %77 = vmatprep.subr.bf16.mxu0 0
    %78 = vmatpush1.bf16.msra.mxu0 0
    %79 = vmatprep.subr.bf16.mxu0 0
    %80 = vmatpush1.bf16.msra.mxu0 0
    %81 = vmatprep.subr.bf16.mxu0 0
    %82 = vmatpush1.bf16.msra.mxu0 0
    %83 = vmatprep.subr.bf16.mxu0 0
    %84 = vmatpush1.bf16.msra.mxu0 0
    %85 = vmatprep.subr.bf16.mxu0 0
    %86 = vmatpush1.bf16.msra.mxu0 0
    %87 = vmatprep.subr.bf16.mxu0 0
    %88 = vmatpush1.bf16.msra.mxu0 0
    %89 = vmatprep.subr.bf16.mxu0 0
    %90 = vmatpush1.bf16.msra.mxu0 0
    %91 = vmatprep.subr.bf16.mxu0 0
    %92 = vmatpush1.bf16.msra.mxu0 0
    %93 = vmatprep.subr.bf16.mxu0 0
    %94 = vmatpush1.bf16.msra.mxu0 0
    %95 = vmatprep.mubr.bf16.mxu0 0
    %96 = vmatmul.mubr.bf16.gmra.mrb[0].mxu0 %v61
    %v97 = vpop.f32.mrb[0].mxu0
    %v98 = vadd.f32 %v40, %v97
    %v99 = vpop.f32.mrb[0].mxu0
    %v100 = vpop.f32.mrb[0].mxu0
    %v101 = vadd.f32 %v40, %v100
    %v102 = vpop.f32.mrb[0].mxu0
    %103 = vdwg.mxu0
    %v104 = vmul.f32 %v98, 0.5
    %v105 = vmul.f32 %v101, 0.5
    %v106 = vmul.f32 %v98, 0.70710677
    %v107 = vmul.f32 %v101, 0.70710677
    %v108 = verf.f32.pop %v106
    %v109 = verf.f32.pop %v107
    %v110 = vadd.f32 %v108, 1.0
    %v111 = vadd.f32 %v109, 1.0
    %v112 = vmul.f32 %v104, %v110
    %v113 = vmul.f32 %v105, %v111
    %v114 = vpack.c.bf16 %v113, %v112
    %v115 = vld [vmem:[%s3] sm:$0xf]
    %v116 = vld [vmem:[%s3 + $0x4] sm:$0xf]
    %v117 = vld [vmem:[%s3 + $0x8] sm:$0xf]
    %v118 = vld [vmem:[%s3 + $0xc] sm:$0xf]
    %v119 = vld [vmem:[%s3 + $0x10] sm:$0xf]
    %v120 = vld [vmem:[%s3 + $0x14] sm:$0xf]
    %v121 = vld [vmem:[%s3 + $0x18] sm:$0xf]
    %v122 = vld [vmem:[%s3 + $0x1c] sm:$0xf]
    %v131 = vunpack.c.l.b16 %v115
    %v132 = vunpack.c.l.b16 %v116
    %v133 = vunpack.c.l.b16 %v117
    %v134 = vunpack.c.l.b16 %v118
    %v135 = vunpack.c.l.b16 %v119
    %v136 = vunpack.c.l.b16 %v120
    %v137 = vunpack.c.l.b16 %v121
    %v138 = vunpack.c.l.b16 %v122
    %v139 = vpack.c.b16 %v132, %v131
    %v140 = vpack.c.b16 %v134, %v133
    %v141 = vpack.c.b16 %v136, %v135
    %v142 = vpack.c.b16 %v138, %v137
    %vm147 = vcmask 523264
    %v149 = vsel %vm147, %v114, 0
    %151 = vmatprep.subr.bf16.mxu0 0
    %152 = vmatpush1.bf16.msra.mxu0 %v139
    %153 = vmatprep.subr.bf16.mxu0 0
    %154 = vmatpush1.bf16.msra.mxu0 %v140
    %155 = vmatprep.subr.bf16.mxu0 0
    %156 = vmatpush1.bf16.msra.mxu0 %v141
    %157 = vmatprep.subr.bf16.mxu0 0
    %158 = vmatpush1.bf16.msra.mxu0 %v142
    %159 = vmatprep.subr.bf16.mxu0 0
    %160 = vmatpush1.bf16.msra.mxu0 0
    %161 = vmatprep.subr.bf16.mxu0 0
    %162 = vmatpush1.bf16.msra.mxu0 0
    %163 = vmatprep.subr.bf16.mxu0 0
    %164 = vmatpush1.bf16.msra.mxu0 0
    %165 = vmatprep.subr.bf16.mxu0 0
    %166 = vmatpush1.bf16.msra.mxu0 0
    %167 = vmatprep.subr.bf16.mxu0 0
    %168 = vmatpush1.bf16.msra.mxu0 0
    %169 = vmatprep.subr.bf16.mxu0 0
    %170 = vmatpush1.bf16.msra.mxu0 0
    %171 = vmatprep.subr.bf16.mxu0 0
    %172 = vmatpush1.bf16.msra.mxu0 0
    %173 = vmatprep.subr.bf16.mxu0 0
    %174 = vmatpush1.bf16.msra.mxu0 0
    %175 = vmatprep.subr.bf16.mxu0 0
    %176 = vmatpush1.bf16.msra.mxu0 0
    %177 = vmatprep.subr.bf16.mxu0 0
    %178 = vmatpush1.bf16.msra.mxu0 0
    %179 = vmatprep.subr.bf16.mxu0 0
    %180 = vmatpush1.bf16.msra.mxu0 0
    %181 = vmatprep.subr.bf16.mxu0 0
    %182 = vmatpush1.bf16.msra.mxu0 0
    %183 = vmatprep.mubr.bf16.mxu0 0
    %184 = vmatmul.mubr.bf16.gmra.mrb[0].mxu0 %v149
    %v185 = vpop.f32.mrb[0].mxu0
    %v186 = vadd.f32 0.0, %v185
    %v187 = vpop.f32.mrb[0].mxu0
    %v188 = vpop.f32.mrb[0].mxu0
    %v189 = vadd.f32 0.0, %v188
    %v190 = vpop.f32.mrb[0].mxu0
    %191 = vdwg.mxu0
    %p192 = scmp.lt.s32.totalorder 0, 0
    // Predicated region
    $region26: #{tpu_custom_call.1} parent=1 // pred_check
      %p193 = pneg %p192
    $region27: #{tpu_custom_call.1} parent=1 // pred_check_branch
      %195 = sbr.rel (%p193) target = $region29
    $region28: #{tpu_custom_call.1} parent=1 // pred_region
      %v196 = vld [vmem:[#allocation2] sm:$0xff]
      %v197 = vld [vmem:[#allocation2 + $0x8] sm:$0xff]
      %v198 = vadd.f32 %v196, %v186
      %v199 = vadd.f32 %v197, %v189
      %200 = vst.msk [vmem:[#allocation2] sm:$0xff] %vm59, %v198
      %201 = vst.msk [vmem:[#allocation2 + $0x8] sm:$0xff] %vm59, %v199
    $region29: #{tpu_custom_call.1} parent=1 // pred_fallthru
      _
    // Predicated region
    $region30: #{tpu_custom_call.1} parent=1 // pred_check
      %p202 = pneg %p22
    $region31: #{tpu_custom_call.1} parent=1 // pred_check_branch
      %204 = sbr.rel (%p202) target = $region33
    $region32: #{tpu_custom_call.1} parent=1 // pred_region
      %v205 = vld [vmem:[#allocation2] sm:$0xff]
      %v206 = vld [vmem:[#allocation2 + $0x8] sm:$0xff]
      %v207 = vadd.f32 %v205, %v186
      %v208 = vadd.f32 %v206, %v189
      %v209 = vld [vmem:[%s4] sm:$0x1]
      %v211 = vlaneseq
      %v212 = vshrl.u32 %v211, 7
      %v213 = vsub.s32 0, %v212
      %v214 = vrot.slane %v209, %v213
      %v216 = vadd.f32 %v207, %v214
      %v217 = vadd.f32 %v208, %v214
      %218 = vst.msk [vmem:[#allocation3] sm:$0xff] %vm59, %v216
      %219 = vst.msk [vmem:[#allocation3 + $0x8] sm:$0xff] %vm59, %v217
    $region33: #{tpu_custom_call.1} parent=1 // pred_fallthru
      _
    // Predicated region
    $region34: #{tpu_custom_call.1} parent=1 // pred_check
      _
    $region35: #{tpu_custom_call.1} parent=1 // pred_check_branch
      %221 = sbr.rel (0) target = $region37
    $region36: #{tpu_custom_call.1} parent=1 // pred_region
      %s223 = ssub.s32 256, 256
      %224 = vsyncadd [#allocation4], %s223
      %s225 = sshll.u32 [#allocation3], 4
      %s226 = int_to_ptr.vmem [resolvable:$true] %s225
      %231 = dma.vmem_to_hbm [thread:$0]  %s226, 256, %s5, [#allocation4], 128, 128, 8
    $region37: #{tpu_custom_call.1} parent=1 // pred_fallthru
      _
    // Predicated region
    $region38: #{tpu_custom_call.1} parent=1 // pred_check
      _
    $region39: #{tpu_custom_call.1} parent=1 // pred_check_branch
      %233 = sbr.rel (0) target = $region41
    $region40: #{tpu_custom_call.1} parent=1 // pred_region
      %234 = dma.done [#allocation4], 256
    $region41: #{tpu_custom_call.1} parent=1 // pred_fallthru
      _
    %235 = vsyncpa [#allocation4], 1

</llo_original>
